<compile_context>
chip_gen: v6e
topology: v6e:2x2x1
jax: 0.10.0
libtpu: 0.0.40
codegen_flags: <defaults>
</compile_context>

<pallas_src>
import functools
import random

import jax
import jax.numpy as jnp
from jax.experimental import pallas as pl
from jax.experimental.pallas import tpu as pltpu

_EPS = 1e-10
_LANCZOS_G = 7.0
_LANCZOS_C0 = 0.99999999999980993
_LANCZOS_COEFFS = (
    676.5203681218851,
    -1259.1392167224028,
    771.32342877765313,
    -176.61502916214059,
    12.507343278686905,
    -0.13857109526572012,
    9.9843695780195716e-6,
    1.5056327351493116e-7,
)
_LOG_SQRT_2PI = 0.9189385332046727  # 0.5 * log(2*pi)


def _lgamma_pos(z):
    """log(Gamma(z)) for z > 0, using only ops with Pallas TPU lowerings."""
    small = z < 0.5
    zz = jnp.where(small, z + 1.0, z)          # shift into the Lanczos domain
    x = zz - 1.0
    a = jnp.full_like(x, _LANCZOS_C0)
    for k, c in enumerate(_LANCZOS_COEFFS, start=1):
        a = a + c / (x + float(k))
    t = x + _LANCZOS_G + 0.5
    lg = _LOG_SQRT_2PI + (x + 0.5) * jnp.log(t) - t + jnp.log(a)
    # Gamma(z) = Gamma(z+1)/z  =>  lgamma(z) = lgamma(z+1) - log(z)
    return jnp.where(small, lg - jnp.log(z), lg)


def _segment_bounds(cols, tailor_rate, segment_type):
    """Static column segment, mirroring the torch module exactly."""
    segment_size = int(cols * (1 - tailor_rate))
    if segment_type == "head":
        return 0, segment_size
    if segment_type == "middle":
        start = (cols - segment_size) // 2
        return start, start + segment_size
    if segment_type == "random":
        # host-side randint, same as the torch module (static per trace)
        start = random.randint(0, cols - segment_size)
        return start, start + segment_size
    return int(cols * tailor_rate), cols        # 'tail' (default)


def _zinb_block_kernel(x_ref, mean_ref, disp_ref, pi_ref, out_ref, *,
                       n_rows, n_cols, block_rows, block_cols,
                       seg_start, seg_end, loss_rate, ridge_lambda):
    f32 = jnp.float32
    x = x_ref[...].astype(f32)
    mean = mean_ref[...].astype(f32)
    disp = disp_ref[...].astype(f32)
    pi = pi_ref[...].astype(f32)

    i = pl.program_id(0)
    j = pl.program_id(1)
    shape = (block_rows, block_cols)
    col_ids = j * block_cols + jax.lax.broadcasted_iota(jnp.int32, shape, 1)

    # In-place `x[:, start:end] = x[:, start:end] * loss_rate` from the module.
    if seg_start < seg_end and loss_rate != 1.0:
        seg = (col_ids >= seg_start) & (col_ids < seg_end)
        x = jnp.where(seg, x * loss_rate, x)

    # Negative-binomial NLL term.
    t1 = (_lgamma_pos(disp + _EPS) + _lgamma_pos(x + 1.0)
          - _lgamma_pos(x + disp + _EPS))
    t2 = ((disp + x) * jnp.log(1.0 + mean / (disp + _EPS))
          + x * (jnp.log(disp + _EPS) - jnp.log(mean + _EPS)))
    nb_case = t1 + t2 - jnp.log(1.0 - pi + _EPS)

    # Zero-inflation term.  base > 0, so base**disp == exp(disp*log(base)).
    base = disp / (disp + mean + _EPS)
    zero_nb = jnp.exp(disp * jnp.log(base))
    zero_case = -jnp.log(pi + (1.0 - pi) * zero_nb + _EPS)

    result = jnp.where(x <= 1e-8, zero_case, nb_case)
    if ridge_lambda > 0.0:
        result = result + ridge_lambda * pi * pi

    # Mask the ragged tail (cdiv grid; no host-side padding copies).
    mask = None
    if n_rows % block_rows:
        row_ids = i * block_rows + jax.lax.broadcasted_iota(jnp.int32, shape, 0)
        mask = row_ids < n_rows
    if n_cols % block_cols:
        cmask = col_ids < n_cols
        mask = cmask if mask is None else (mask & cmask)
    if mask is not None:
        result = jnp.where(mask, result, 0.0)

    # Reduce the block to one (8,128) partial-sum tile using only vreg-aligned
    # static slices + adds (no cross-lane work, no scalar broadcast).
    acc = jnp.zeros((8, 128), f32)
    for r in range(block_rows // 8):
        for c in range(block_cols // 128):
            acc = acc + result[r * 8:(r + 1) * 8, c * 128:(c + 1) * 128]
    out_ref[...] = acc


def zinb_loss(target, mean, disp, pi, scale_factor=1.0, ridge_lambda=0.0,
              tailor_rate=0.9, loss_rate=2, segment_type="tail",
              block_rows=256, block_cols=256):
    """Pallas-TPU ZINBLoss.forward.  Returns a scalar (mean over all elements)."""
    del scale_factor  # the torch module does `mean = mean * 1` (scale unused)
    assert target.ndim == 2
    assert target.shape == mean.shape == disp.shape == pi.shape
    B, G = target.shape

    seg_start, seg_end = _segment_bounds(G, tailor_rate, segment_type)

    def _round_up(a, b):
        return ((a + b - 1) // b) * b

    def _cdiv(a, b):
        return (a + b - 1) // b

    bB = min(block_rows, _round_up(B, 8))       # sublane-dim multiple of 8
    bG = min(block_cols, _round_up(G, 128))     # lane-dim multiple of 128
    gb = _cdiv(B, bB)
    gg = _cdiv(G, bG)

    kernel = functools.partial(
        _zinb_block_kernel,
        n_rows=B, n_cols=G, block_rows=bB, block_cols=bG,
        seg_start=seg_start, seg_end=seg_end,
        loss_rate=float(loss_rate), ridge_lambda=float(ridge_lambda))

    n = B * G
    itemsize = max(int(jnp.dtype(target.dtype).itemsize), 4)
    cost = pl.CostEstimate(
        flops=80 * n,
        transcendentals=24 * n,
        bytes_accessed=4 * n * itemsize + gb * gg * 8 * 128 * 4)

    in_spec = pl.BlockSpec((bB, bG), lambda i, j: (i, j))
    partials = pl.pallas_call(
        kernel,
        out_shape=jax.ShapeDtypeStruct((gb * 8, gg * 128), jnp.float32),
        grid_spec=pltpu.PrefetchScalarGridSpec(
            num_scalar_prefetch=0,
            grid=(gb, gg),
            in_specs=[in_spec, in_spec, in_spec, in_spec],
            out_specs=pl.BlockSpec((8, 128), lambda i, j: (i, j)),
        ),
        compiler_params=pltpu.CompilerParams(
            dimension_semantics=("parallel", "parallel"),
            vmem_limit_bytes=32 * 1024 * 1024,
        ),
        cost_estimate=cost,
    )(target, mean, disp, pi)

    return jnp.sum(partials) / jnp.float32(n)


def _zinb_loss_ref(target, mean, disp, pi, ridge_lambda=0.0, tailor_rate=0.9,
                   loss_rate=2, segment_type="tail"):
    """Plain-JAX reference mirroring the PyTorch ZINBLoss.forward."""
    eps = 1e-10
    x = target.astype(jnp.float32)
    mean = mean.astype(jnp.float32)
    disp = disp.astype(jnp.float32)
    pi = pi.astype(jnp.float32)
    cols = x.shape[1]
    start, end = _segment_bounds(cols, tailor_rate, segment_type)
    col = jnp.arange(cols)
    seg = (col >= start) & (col < end)
    x = jnp.where(seg[None, :], x * loss_rate, x)
    t1 = (jax.lax.lgamma(disp + eps) + jax.lax.lgamma(x + 1.0)
          - jax.lax.lgamma(x + disp + eps))
    t2 = ((disp + x) * jnp.log(1.0 + mean / (disp + eps))
          + x * (jnp.log(disp + eps) - jnp.log(mean + eps)))
    nb_case = t1 + t2 - jnp.log(1.0 - pi + eps)
    zero_nb = jnp.power(disp / (disp + mean + eps), disp)
    zero_case = -jnp.log(pi + (1.0 - pi) * zero_nb + eps)
    result = jnp.where(x <= 1e-8, zero_case, nb_case)
    if ridge_lambda > 0:
        result = result + ridge_lambda * jnp.square(pi)
    return jnp.mean(result)


if __name__ == "__main__":
    key = jax.random.PRNGKey(0)
    k1, k2, k3, k4 = jax.random.split(key, 4)
    B, G = 8, 32  # (batch, genes): ZINBLoss slices along dim 1, so inputs are 2-D

    # Count-like targets (zeros included, so the zero-inflated branch is exercised).
    target = jnp.floor(jax.random.exponential(k1, (B, G)) * 3.0).astype(jnp.float32)
    mean = jax.nn.softplus(jax.random.normal(k2, (B, G))).astype(jnp.float32)
    disp = jnp.clip(jax.nn.softplus(jax.random.normal(k3, (B, G))),
                    1e-4, 1e4).astype(jnp.float32)
    pi = jax.nn.sigmoid(jax.random.normal(k4, (B, G))).astype(jnp.float32)

    loss = zinb_loss(target, mean, disp, pi)
    loss = jax.block_until_ready(loss)

    ref = _zinb_loss_ref(target, mean, disp, pi)
    assert loss.shape == ()
    assert bool(jnp.isfinite(loss))
    assert jnp.allclose(loss, ref, rtol=1e-3, atol=1e-3), (loss, ref)
    print("KERNEL_OK")
</pallas_src>

<mosaic_0001>
module attributes {stable_mosaic.version = 11 : i64} {
  func.func @_zinb_block_kernel(%arg0: i32, %arg1: i32, %arg2: memref<8x128xf32, #tpu.memory_space<vmem>>, %arg3: memref<8x128xf32, #tpu.memory_space<vmem>>, %arg4: memref<8x128xf32, #tpu.memory_space<vmem>>, %arg5: memref<8x128xf32, #tpu.memory_space<vmem>>, %arg6: memref<8x128xf32, #tpu.memory_space<vmem>>) attributes {dimension_semantics = [#tpu.dimension_semantics<parallel>, #tpu.dimension_semantics<parallel>], iteration_bounds = array<i64: 1, 1>, scalar_prefetch = 0 : i64, scratch_operands = 0 : i64, tpu.core_type = #tpu.core_type<tc>, window_params = [{transform_indices = @transform_0, window_bounds = array<i64: 8, 128>}, {transform_indices = @transform_1, window_bounds = array<i64: 8, 128>}, {transform_indices = @transform_2, window_bounds = array<i64: 8, 128>}, {transform_indices = @transform_3, window_bounds = array<i64: 8, 128>}, {transform_indices = @transform_4, window_bounds = array<i64: 8, 128>}]} {
    %c0 = arith.constant 0 : index
    %c0_0 = arith.constant 0 : index
    %0 = vector.load %arg2[%c0, %c0_0] : memref<8x128xf32, #tpu.memory_space<vmem>>, vector<8x128xf32>
    %c0_1 = arith.constant 0 : index
    %c0_2 = arith.constant 0 : index
    %1 = vector.load %arg3[%c0_1, %c0_2] : memref<8x128xf32, #tpu.memory_space<vmem>>, vector<8x128xf32>
    %c0_3 = arith.constant 0 : index
    %c0_4 = arith.constant 0 : index
    %2 = vector.load %arg4[%c0_3, %c0_4] : memref<8x128xf32, #tpu.memory_space<vmem>>, vector<8x128xf32>
    %c0_5 = arith.constant 0 : index
    %c0_6 = arith.constant 0 : index
    %3 = vector.load %arg5[%c0_5, %c0_6] : memref<8x128xf32, #tpu.memory_space<vmem>>, vector<8x128xf32>
    %c128_i32 = arith.constant 128 : i32
    %4 = arith.muli %arg1, %c128_i32 : i32
    %5 = tpu.iota {dimensions = array<i32: 1>} : vector<8x128xi32>
    %6 = vector.broadcast %4 : i32 to vector<8x128xi32>
    %7 = arith.addi %6, %5 : vector<8x128xi32>
    %c28_i32 = arith.constant 28 : i32
    %8 = vector.broadcast %c28_i32 : i32 to vector<8x128xi32>
    %9 = arith.cmpi sge, %7, %8 : vector<8x128xi32>
    %c32_i32 = arith.constant 32 : i32
    %10 = vector.broadcast %c32_i32 : i32 to vector<8x128xi32>
    %11 = arith.cmpi slt, %7, %10 : vector<8x128xi32>
    %12 = arith.andi %9, %11 : vector<8x128xi1>
    %cst = arith.constant 2.000000e+00 : f32
    %13 = vector.broadcast %cst : f32 to vector<8x128xf32>
    %14 = arith.mulf %0, %13 : vector<8x128xf32>
    %15 = arith.select %12, %14, %0 : vector<8x128xi1>, vector<8x128xf32>
    %cst_7 = arith.constant 1.000000e-10 : f32
    %16 = vector.broadcast %cst_7 : f32 to vector<8x128xf32>
    %17 = arith.addf %2, %16 : vector<8x128xf32>
    %cst_8 = arith.constant 5.000000e-01 : f32
    %18 = vector.broadcast %cst_8 : f32 to vector<8x128xf32>
    %19 = arith.cmpf olt, %17, %18 : vector<8x128xf32>
    %cst_9 = arith.constant 1.000000e+00 : f32
    %20 = vector.broadcast %cst_9 : f32 to vector<8x128xf32>
    %21 = arith.addf %17, %20 : vector<8x128xf32>
    %22 = arith.select %19, %21, %17 : vector<8x128xi1>, vector<8x128xf32>
    %cst_10 = arith.constant 1.000000e+00 : f32
    %23 = vector.broadcast %cst_10 : f32 to vector<8x128xf32>
    %24 = arith.subf %22, %23 : vector<8x128xf32>
    %cst_11 = arith.constant 1.000000e+00 : f32
    %25 = vector.broadcast %cst_11 : f32 to vector<8x128xf32>
    %cst_12 = arith.constant 1.000000e+00 : f32
    %26 = vector.broadcast %cst_12 : f32 to vector<8x128xf32>
    %27 = arith.addf %24, %26 : vector<8x128xf32>
    %cst_13 = arith.constant 676.520386 : f32
    %28 = vector.broadcast %cst_13 : f32 to vector<8x128xf32>
    %29 = arith.divf %28, %27 : vector<8x128xf32>
    %30 = arith.addf %25, %29 : vector<8x128xf32>
    %cst_14 = arith.constant 2.000000e+00 : f32
    %31 = vector.broadcast %cst_14 : f32 to vector<8x128xf32>
    %32 = arith.addf %24, %31 : vector<8x128xf32>
    %cst_15 = arith.constant -1259.13916 : f32
    %33 = vector.broadcast %cst_15 : f32 to vector<8x128xf32>
    %34 = arith.divf %33, %32 : vector<8x128xf32>
    %35 = arith.addf %30, %34 : vector<8x128xf32>
    %cst_16 = arith.constant 3.000000e+00 : f32
    %36 = vector.broadcast %cst_16 : f32 to vector<8x128xf32>
    %37 = arith.addf %24, %36 : vector<8x128xf32>
    %cst_17 = arith.constant 771.323425 : f32
    %38 = vector.broadcast %cst_17 : f32 to vector<8x128xf32>
    %39 = arith.divf %38, %37 : vector<8x128xf32>
    %40 = arith.addf %35, %39 : vector<8x128xf32>
    %cst_18 = arith.constant 4.000000e+00 : f32
    %41 = vector.broadcast %cst_18 : f32 to vector<8x128xf32>
    %42 = arith.addf %24, %41 : vector<8x128xf32>
    %cst_19 = arith.constant -176.615036 : f32
    %43 = vector.broadcast %cst_19 : f32 to vector<8x128xf32>
    %44 = arith.divf %43, %42 : vector<8x128xf32>
    %45 = arith.addf %40, %44 : vector<8x128xf32>
    %cst_20 = arith.constant 5.000000e+00 : f32
    %46 = vector.broadcast %cst_20 : f32 to vector<8x128xf32>
    %47 = arith.addf %24, %46 : vector<8x128xf32>
    %cst_21 = arith.constant 12.5073433 : f32
    %48 = vector.broadcast %cst_21 : f32 to vector<8x128xf32>
    %49 = arith.divf %48, %47 : vector<8x128xf32>
    %50 = arith.addf %45, %49 : vector<8x128xf32>
    %cst_22 = arith.constant 6.000000e+00 : f32
    %51 = vector.broadcast %cst_22 : f32 to vector<8x128xf32>
    %52 = arith.addf %24, %51 : vector<8x128xf32>
    %cst_23 = arith.constant -0.138571098 : f32
    %53 = vector.broadcast %cst_23 : f32 to vector<8x128xf32>
    %54 = arith.divf %53, %52 : vector<8x128xf32>
    %55 = arith.addf %50, %54 : vector<8x128xf32>
    %cst_24 = arith.constant 7.000000e+00 : f32
    %56 = vector.broadcast %cst_24 : f32 to vector<8x128xf32>
    %57 = arith.addf %24, %56 : vector<8x128xf32>
    %cst_25 = arith.constant 9.98436917E-6 : f32
    %58 = vector.broadcast %cst_25 : f32 to vector<8x128xf32>
    %59 = arith.divf %58, %57 : vector<8x128xf32>
    %60 = arith.addf %55, %59 : vector<8x128xf32>
    %cst_26 = arith.constant 8.000000e+00 : f32
    %61 = vector.broadcast %cst_26 : f32 to vector<8x128xf32>
    %62 = arith.addf %24, %61 : vector<8x128xf32>
    %cst_27 = arith.constant 1.50563267E-7 : f32
    %63 = vector.broadcast %cst_27 : f32 to vector<8x128xf32>
    %64 = arith.divf %63, %62 : vector<8x128xf32>
    %65 = arith.addf %60, %64 : vector<8x128xf32>
    %cst_28 = arith.constant 7.000000e+00 : f32
    %66 = vector.broadcast %cst_28 : f32 to vector<8x128xf32>
    %67 = arith.addf %24, %66 : vector<8x128xf32>
    %cst_29 = arith.constant 5.000000e-01 : f32
    %68 = vector.broadcast %cst_29 : f32 to vector<8x128xf32>
    %69 = arith.addf %67, %68 : vector<8x128xf32>
    %cst_30 = arith.constant 5.000000e-01 : f32
    %70 = vector.broadcast %cst_30 : f32 to vector<8x128xf32>
    %71 = arith.addf %24, %70 : vector<8x128xf32>
    %72 = math.log %69 : vector<8x128xf32>
    %73 = arith.mulf %71, %72 : vector<8x128xf32>
    %cst_31 = arith.constant 0.918938517 : f32
    %74 = vector.broadcast %cst_31 : f32 to vector<8x128xf32>
    %75 = arith.addf %74, %73 : vector<8x128xf32>
    %76 = arith.subf %75, %69 : vector<8x128xf32>
    %77 = math.log %65 : vector<8x128xf32>
    %78 = arith.addf %76, %77 : vector<8x128xf32>
    %79 = math.log %17 : vector<8x128xf32>
    %80 = arith.subf %78, %79 : vector<8x128xf32>
    %81 = arith.select %19, %80, %78 : vector<8x128xi1>, vector<8x128xf32>
    %cst_32 = arith.constant 1.000000e+00 : f32
    %82 = vector.broadcast %cst_32 : f32 to vector<8x128xf32>
    %83 = arith.addf %15, %82 : vector<8x128xf32>
    %cst_33 = arith.constant 5.000000e-01 : f32
    %84 = vector.broadcast %cst_33 : f32 to vector<8x128xf32>
    %85 = arith.cmpf olt, %83, %84 : vector<8x128xf32>
    %cst_34 = arith.constant 1.000000e+00 : f32
    %86 = vector.broadcast %cst_34 : f32 to vector<8x128xf32>
    %87 = arith.addf %83, %86 : vector<8x128xf32>
    %88 = arith.select %85, %87, %83 : vector<8x128xi1>, vector<8x128xf32>
    %cst_35 = arith.constant 1.000000e+00 : f32
    %89 = vector.broadcast %cst_35 : f32 to vector<8x128xf32>
    %90 = arith.subf %88, %89 : vector<8x128xf32>
    %cst_36 = arith.constant 1.000000e+00 : f32
    %91 = vector.broadcast %cst_36 : f32 to vector<8x128xf32>
    %cst_37 = arith.constant 1.000000e+00 : f32
    %92 = vector.broadcast %cst_37 : f32 to vector<8x128xf32>
    %93 = arith.addf %90, %92 : vector<8x128xf32>
    %cst_38 = arith.constant 676.520386 : f32
    %94 = vector.broadcast %cst_38 : f32 to vector<8x128xf32>
    %95 = arith.divf %94, %93 : vector<8x128xf32>
    %96 = arith.addf %91, %95 : vector<8x128xf32>
    %cst_39 = arith.constant 2.000000e+00 : f32
    %97 = vector.broadcast %cst_39 : f32 to vector<8x128xf32>
    %98 = arith.addf %90, %97 : vector<8x128xf32>
    %cst_40 = arith.constant -1259.13916 : f32
    %99 = vector.broadcast %cst_40 : f32 to vector<8x128xf32>
    %100 = arith.divf %99, %98 : vector<8x128xf32>
    %101 = arith.addf %96, %100 : vector<8x128xf32>
    %cst_41 = arith.constant 3.000000e+00 : f32
    %102 = vector.broadcast %cst_41 : f32 to vector<8x128xf32>
    %103 = arith.addf %90, %102 : vector<8x128xf32>
    %cst_42 = arith.constant 771.323425 : f32
    %104 = vector.broadcast %cst_42 : f32 to vector<8x128xf32>
    %105 = arith.divf %104, %103 : vector<8x128xf32>
    %106 = arith.addf %101, %105 : vector<8x128xf32>
    %cst_43 = arith.constant 4.000000e+00 : f32
    %107 = vector.broadcast %cst_43 : f32 to vector<8x128xf32>
    %108 = arith.addf %90, %107 : vector<8x128xf32>
    %cst_44 = arith.constant -176.615036 : f32
    %109 = vector.broadcast %cst_44 : f32 to vector<8x128xf32>
    %110 = arith.divf %109, %108 : vector<8x128xf32>
    %111 = arith.addf %106, %110 : vector<8x128xf32>
    %cst_45 = arith.constant 5.000000e+00 : f32
    %112 = vector.broadcast %cst_45 : f32 to vector<8x128xf32>
    %113 = arith.addf %90, %112 : vector<8x128xf32>
    %cst_46 = arith.constant 12.5073433 : f32
    %114 = vector.broadcast %cst_46 : f32 to vector<8x128xf32>
    %115 = arith.divf %114, %113 : vector<8x128xf32>
    %116 = arith.addf %111, %115 : vector<8x128xf32>
    %cst_47 = arith.constant 6.000000e+00 : f32
    %117 = vector.broadcast %cst_47 : f32 to vector<8x128xf32>
    %118 = arith.addf %90, %117 : vector<8x128xf32>
    %cst_48 = arith.constant -0.138571098 : f32
    %119 = vector.broadcast %cst_48 : f32 to vector<8x128xf32>
    %120 = arith.divf %119, %118 : vector<8x128xf32>
    %121 = arith.addf %116, %120 : vector<8x128xf32>
    %cst_49 = arith.constant 7.000000e+00 : f32
    %122 = vector.broadcast %cst_49 : f32 to vector<8x128xf32>
    %123 = arith.addf %90, %122 : vector<8x128xf32>
    %cst_50 = arith.constant 9.98436917E-6 : f32
    %124 = vector.broadcast %cst_50 : f32 to vector<8x128xf32>
    %125 = arith.divf %124, %123 : vector<8x128xf32>
    %126 = arith.addf %121, %125 : vector<8x128xf32>
    %cst_51 = arith.constant 8.000000e+00 : f32
    %127 = vector.broadcast %cst_51 : f32 to vector<8x128xf32>
    %128 = arith.addf %90, %127 : vector<8x128xf32>
    %cst_52 = arith.constant 1.50563267E-7 : f32
    %129 = vector.broadcast %cst_52 : f32 to vector<8x128xf32>
    %130 = arith.divf %129, %128 : vector<8x128xf32>
    %131 = arith.addf %126, %130 : vector<8x128xf32>
    %cst_53 = arith.constant 7.000000e+00 : f32
    %132 = vector.broadcast %cst_53 : f32 to vector<8x128xf32>
    %133 = arith.addf %90, %132 : vector<8x128xf32>
    %cst_54 = arith.constant 5.000000e-01 : f32
    %134 = vector.broadcast %cst_54 : f32 to vector<8x128xf32>
    %135 = arith.addf %133, %134 : vector<8x128xf32>
    %cst_55 = arith.constant 5.000000e-01 : f32
    %136 = vector.broadcast %cst_55 : f32 to vector<8x128xf32>
    %137 = arith.addf %90, %136 : vector<8x128xf32>
    %138 = math.log %135 : vector<8x128xf32>
    %139 = arith.mulf %137, %138 : vector<8x128xf32>
    %cst_56 = arith.constant 0.918938517 : f32
    %140 = vector.broadcast %cst_56 : f32 to vector<8x128xf32>
    %141 = arith.addf %140, %139 : vector<8x128xf32>
    %142 = arith.subf %141, %135 : vector<8x128xf32>
    %143 = math.log %131 : vector<8x128xf32>
    %144 = arith.addf %142, %143 : vector<8x128xf32>
    %145 = math.log %83 : vector<8x128xf32>
    %146 = arith.subf %144, %145 : vector<8x128xf32>
    %147 = arith.select %85, %146, %144 : vector<8x128xi1>, vector<8x128xf32>
    %148 = arith.addf %81, %147 : vector<8x128xf32>
    %149 = arith.addf %15, %2 : vector<8x128xf32>
    %cst_57 = arith.constant 1.000000e-10 : f32
    %150 = vector.broadcast %cst_57 : f32 to vector<8x128xf32>
    %151 = arith.addf %149, %150 : vector<8x128xf32>
    %cst_58 = arith.constant 5.000000e-01 : f32
    %152 = vector.broadcast %cst_58 : f32 to vector<8x128xf32>
    %153 = arith.cmpf olt, %151, %152 : vector<8x128xf32>
    %cst_59 = arith.constant 1.000000e+00 : f32
    %154 = vector.broadcast %cst_59 : f32 to vector<8x128xf32>
    %155 = arith.addf %151, %154 : vector<8x128xf32>
    %156 = arith.select %153, %155, %151 : vector<8x128xi1>, vector<8x128xf32>
    %cst_60 = arith.constant 1.000000e+00 : f32
    %157 = vector.broadcast %cst_60 : f32 to vector<8x128xf32>
    %158 = arith.subf %156, %157 : vector<8x128xf32>
    %cst_61 = arith.constant 1.000000e+00 : f32
    %159 = vector.broadcast %cst_61 : f32 to vector<8x128xf32>
    %cst_62 = arith.constant 1.000000e+00 : f32
    %160 = vector.broadcast %cst_62 : f32 to vector<8x128xf32>
    %161 = arith.addf %158, %160 : vector<8x128xf32>
    %cst_63 = arith.constant 676.520386 : f32
    %162 = vector.broadcast %cst_63 : f32 to vector<8x128xf32>
    %163 = arith.divf %162, %161 : vector<8x128xf32>
    %164 = arith.addf %159, %163 : vector<8x128xf32>
    %cst_64 = arith.constant 2.000000e+00 : f32
    %165 = vector.broadcast %cst_64 : f32 to vector<8x128xf32>
    %166 = arith.addf %158, %165 : vector<8x128xf32>
    %cst_65 = arith.constant -1259.13916 : f32
    %167 = vector.broadcast %cst_65 : f32 to vector<8x128xf32>
    %168 = arith.divf %167, %166 : vector<8x128xf32>
    %169 = arith.addf %164, %168 : vector<8x128xf32>
    %cst_66 = arith.constant 3.000000e+00 : f32
    %170 = vector.broadcast %cst_66 : f32 to vector<8x128xf32>
    %171 = arith.addf %158, %170 : vector<8x128xf32>
    %cst_67 = arith.constant 771.323425 : f32
    %172 = vector.broadcast %cst_67 : f32 to vector<8x128xf32>
    %173 = arith.divf %172, %171 : vector<8x128xf32>
    %174 = arith.addf %169, %173 : vector<8x128xf32>
    %cst_68 = arith.constant 4.000000e+00 : f32
    %175 = vector.broadcast %cst_68 : f32 to vector<8x128xf32>
    %176 = arith.addf %158, %175 : vector<8x128xf32>
    %cst_69 = arith.constant -176.615036 : f32
    %177 = vector.broadcast %cst_69 : f32 to vector<8x128xf32>
    %178 = arith.divf %177, %176 : vector<8x128xf32>
    %179 = arith.addf %174, %178 : vector<8x128xf32>
    %cst_70 = arith.constant 5.000000e+00 : f32
    %180 = vector.broadcast %cst_70 : f32 to vector<8x128xf32>
    %181 = arith.addf %158, %180 : vector<8x128xf32>
    %cst_71 = arith.constant 12.5073433 : f32
    %182 = vector.broadcast %cst_71 : f32 to vector<8x128xf32>
    %183 = arith.divf %182, %181 : vector<8x128xf32>
    %184 = arith.addf %179, %183 : vector<8x128xf32>
    %cst_72 = arith.constant 6.000000e+00 : f32
    %185 = vector.broadcast %cst_72 : f32 to vector<8x128xf32>
    %186 = arith.addf %158, %185 : vector<8x128xf32>
    %cst_73 = arith.constant -0.138571098 : f32
    %187 = vector.broadcast %cst_73 : f32 to vector<8x128xf32>
    %188 = arith.divf %187, %186 : vector<8x128xf32>
    %189 = arith.addf %184, %188 : vector<8x128xf32>
    %cst_74 = arith.constant 7.000000e+00 : f32
    %190 = vector.broadcast %cst_74 : f32 to vector<8x128xf32>
    %191 = arith.addf %158, %190 : vector<8x128xf32>
    %cst_75 = arith.constant 9.98436917E-6 : f32
    %192 = vector.broadcast %cst_75 : f32 to vector<8x128xf32>
    %193 = arith.divf %192, %191 : vector<8x128xf32>
    %194 = arith.addf %189, %193 : vector<8x128xf32>
    %cst_76 = arith.constant 8.000000e+00 : f32
    %195 = vector.broadcast %cst_76 : f32 to vector<8x128xf32>
    %196 = arith.addf %158, %195 : vector<8x128xf32>
    %cst_77 = arith.constant 1.50563267E-7 : f32
    %197 = vector.broadcast %cst_77 : f32 to vector<8x128xf32>
    %198 = arith.divf %197, %196 : vector<8x128xf32>
    %199 = arith.addf %194, %198 : vector<8x128xf32>
    %cst_78 = arith.constant 7.000000e+00 : f32
    %200 = vector.broadcast %cst_78 : f32 to vector<8x128xf32>
    %201 = arith.addf %158, %200 : vector<8x128xf32>
    %cst_79 = arith.constant 5.000000e-01 : f32
    %202 = vector.broadcast %cst_79 : f32 to vector<8x128xf32>
    %203 = arith.addf %201, %202 : vector<8x128xf32>
    %cst_80 = arith.constant 5.000000e-01 : f32
    %204 = vector.broadcast %cst_80 : f32 to vector<8x128xf32>
    %205 = arith.addf %158, %204 : vector<8x128xf32>
    %206 = math.log %203 : vector<8x128xf32>
    %207 = arith.mulf %205, %206 : vector<8x128xf32>
    %cst_81 = arith.constant 0.918938517 : f32
    %208 = vector.broadcast %cst_81 : f32 to vector<8x128xf32>
    %209 = arith.addf %208, %207 : vector<8x128xf32>
    %210 = arith.subf %209, %203 : vector<8x128xf32>
    %211 = math.log %199 : vector<8x128xf32>
    %212 = arith.addf %210, %211 : vector<8x128xf32>
    %213 = math.log %151 : vector<8x128xf32>
    %214 = arith.subf %212, %213 : vector<8x128xf32>
    %215 = arith.select %153, %214, %212 : vector<8x128xi1>, vector<8x128xf32>
    %216 = arith.subf %148, %215 : vector<8x128xf32>
    %217 = arith.addf %2, %15 : vector<8x128xf32>
    %cst_82 = arith.constant 1.000000e-10 : f32
    %218 = vector.broadcast %cst_82 : f32 to vector<8x128xf32>
    %219 = arith.addf %2, %218 : vector<8x128xf32>
    %220 = arith.divf %1, %219 : vector<8x128xf32>
    %cst_83 = arith.constant 1.000000e+00 : f32
    %221 = vector.broadcast %cst_83 : f32 to vector<8x128xf32>
    %222 = arith.addf %221, %220 : vector<8x128xf32>
    %223 = math.log %222 : vector<8x128xf32>
    %224 = arith.mulf %217, %223 : vector<8x128xf32>
    %cst_84 = arith.constant 1.000000e-10 : f32
    %225 = vector.broadcast %cst_84 : f32 to vector<8x128xf32>
    %226 = arith.addf %2, %225 : vector<8x128xf32>
    %227 = math.log %226 : vector<8x128xf32>
    %cst_85 = arith.constant 1.000000e-10 : f32
    %228 = vector.broadcast %cst_85 : f32 to vector<8x128xf32>
    %229 = arith.addf %1, %228 : vector<8x128xf32>
    %230 = math.log %229 : vector<8x128xf32>
    %231 = arith.subf %227, %230 : vector<8x128xf32>
    %232 = arith.mulf %15, %231 : vector<8x128xf32>
    %233 = arith.addf %224, %232 : vector<8x128xf32>
    %234 = arith.addf %216, %233 : vector<8x128xf32>
    %cst_86 = arith.constant 1.000000e+00 : f32
    %235 = vector.broadcast %cst_86 : f32 to vector<8x128xf32>
    %236 = arith.subf %235, %3 : vector<8x128xf32>
    %cst_87 = arith.constant 1.000000e-10 : f32
    %237 = vector.broadcast %cst_87 : f32 to vector<8x128xf32>
    %238 = arith.addf %236, %237 : vector<8x128xf32>
    %239 = math.log %238 : vector<8x128xf32>
    %240 = arith.subf %234, %239 : vector<8x128xf32>
    %241 = arith.addf %2, %1 : vector<8x128xf32>
    %cst_88 = arith.constant 1.000000e-10 : f32
    %242 = vector.broadcast %cst_88 : f32 to vector<8x128xf32>
    %243 = arith.addf %241, %242 : vector<8x128xf32>
    %244 = arith.divf %2, %243 : vector<8x128xf32>
    %245 = math.log %244 : vector<8x128xf32>
    %246 = arith.mulf %2, %245 : vector<8x128xf32>
    %247 = math.exp %246 : vector<8x128xf32>
    %cst_89 = arith.constant 1.000000e+00 : f32
    %248 = vector.broadcast %cst_89 : f32 to vector<8x128xf32>
    %249 = arith.subf %248, %3 : vector<8x128xf32>
    %250 = arith.mulf %249, %247 : vector<8x128xf32>
    %251 = arith.addf %3, %250 : vector<8x128xf32>
    %cst_90 = arith.constant 1.000000e-10 : f32
    %252 = vector.broadcast %cst_90 : f32 to vector<8x128xf32>
    %253 = arith.addf %251, %252 : vector<8x128xf32>
    %254 = math.log %253 : vector<8x128xf32>
    %cst_91 = arith.constant 0.000000e+00 : f32
    %255 = vector.broadcast %cst_91 : f32 to vector<8x128xf32>
    %256 = arith.subf %255, %254 : vector<8x128xf32>
    %cst_92 = arith.constant 9.99999993E-9 : f32
    %257 = vector.broadcast %cst_92 : f32 to vector<8x128xf32>
    %258 = arith.cmpf ole, %15, %257 : vector<8x128xf32>
    %259 = arith.select %258, %256, %240 : vector<8x128xi1>, vector<8x128xf32>
    %c32_i32_93 = arith.constant 32 : i32
    %260 = vector.broadcast %c32_i32_93 : i32 to vector<8x128xi32>
    %261 = arith.cmpi slt, %7, %260 : vector<8x128xi32>
    %cst_94 = arith.constant 0.000000e+00 : f32
    %262 = vector.broadcast %cst_94 : f32 to vector<8x128xf32>
    %263 = arith.select %261, %259, %262 : vector<8x128xi1>, vector<8x128xf32>
    %cst_95 = arith.constant 0.000000e+00 : f32
    %264 = vector.broadcast %cst_95 : f32 to vector<8x128xf32>
    %265 = arith.addf %264, %263 : vector<8x128xf32>
    %c0_96 = arith.constant 0 : index
    %c0_97 = arith.constant 0 : index
    %266 = vector.load %arg6[%c0_96, %c0_97] : memref<8x128xf32, #tpu.memory_space<vmem>>, vector<8x128xf32>
    tpu.vector_store %arg6[%c0_96, %c0_97], %265 {strides = array<i32>} : memref<8x128xf32, #tpu.memory_space<vmem>>, vector<8x128xf32>,
    return
  }
  func.func @transform_0(%arg0: i32, %arg1: i32) -> (i32, i32) {
    %c0_i32 = arith.constant 0 : i32
    return %arg0, %arg1 : i32, i32
  }
  func.func @transform_1(%arg0: i32, %arg1: i32) -> (i32, i32) {
    %c0_i32 = arith.constant 0 : i32
    return %arg0, %arg1 : i32, i32
  }
  func.func @transform_2(%arg0: i32, %arg1: i32) -> (i32, i32) {
    %c0_i32 = arith.constant 0 : i32
    return %arg0, %arg1 : i32, i32
  }
  func.func @transform_3(%arg0: i32, %arg1: i32) -> (i32, i32) {
    %c0_i32 = arith.constant 0 : i32
    return %arg0, %arg1 : i32, i32
  }
  func.func @transform_4(%arg0: i32, %arg1: i32) -> (i32, i32) {
    %c0_i32 = arith.constant 0 : i32
    return %arg0, %arg1 : i32, i32
  }
}

</mosaic_0001>

<llo_original>
// kernel: tpu_custom_call.1
$region0: #{tpu_custom_call.1}
  #allocation0 [shape = 'u32[]', space=smem, size = 0x4, offset = 0x4, fixed_abs, tag = 'smem constant byte address 0x4 - core index']
  #allocation1 [shape = 'u32[144,128]{1,0:T(1,128)}', space=vmem, size = 0x12000, scoped, tag = 'internal scratch']
  %s0 = inlined_call_operand.hbm [shape: f32[8,32], index: 0, kind: input, shape index: {}]
  %s1 = inlined_call_operand.hbm [shape: f32[8,32], index: 1, kind: input, shape index: {}]
  %s2 = inlined_call_operand.hbm [shape: f32[8,32], index: 2, kind: input, shape index: {}]
  %s3 = inlined_call_operand.hbm [shape: f32[8,32], index: 3, kind: input, shape index: {}]
  %s4 = inlined_call_operand.hbm [shape: f32[8,128], index: 4, kind: output, shape index: {}]
  %s5 = sld [smem:[#allocation0]]
  $region42: #{tpu_custom_call.1} parent=0
    _
  %s7 = ssub.s32 1, %s5
  %s8 = scalar_select 0, %s7, %s5
  $region1: #{tpu_custom_call.1} parent=0
    #allocation2 [shape = 'u8[4096]{0}', space=vmem, size = 0x1000, scoped, tag = 'input window, operand 0, single buffered']
    #allocation3 [shape = 's32[1]{0}', space=sflag, size = 0x4, scoped, tag = 'scoped memory for tpu_custom_call.1']
    #allocation4 [shape = 's32[1]{0}', space=sflag, size = 0x4, scoped, tag = 'scoped memory for tpu_custom_call.1']
    #allocation5 [shape = 'u8[4096]{0}', space=vmem, size = 0x1000, scoped, tag = 'input window, operand 1, single buffered']
    #allocation6 [shape = 's32[1]{0}', space=sflag, size = 0x4, scoped, tag = 'scoped memory for tpu_custom_call.1']
    #allocation7 [shape = 'u8[4096]{0}', space=vmem, size = 0x1000, scoped, tag = 'input window, operand 2, single buffered']
    #allocation8 [shape = 'u8[4096]{0}', space=vmem, size = 0x1000, scoped, tag = 'input window, operand 3, single buffered']
    #allocation9 [shape = 's32[1]{0}', space=sflag, size = 0x4, scoped, tag = 'scoped memory for tpu_custom_call.1']
    #allocation10 [shape = 'u8[4096]{0}', space=vmem, size = 0x1000, scoped, tag = 'output window, operand 0, single buffered']
    %9 = vsyncpa [#allocation3], 0
    %10 = vsyncpa [#allocation6], 0
    %11 = vsyncpa [#allocation9], 0
    %12 = vsyncpa [#allocation4], 0
    // Predicated region
    $region2: #{tpu_custom_call.1} parent=1 // pred_check
      _
    $region3: #{tpu_custom_call.1} parent=1 // pred_check_branch
      %14 = sbr.rel (0) target = $region5
    $region4: #{tpu_custom_call.1} parent=1 // pred_region
      %s16 = ssub.s32 128, 128
      %17 = vsyncadd [#allocation3], %s16
      %s19 = sshll.u32 [#allocation2], 4
      %s20 = int_to_ptr.vmem [resolvable:$true] %s19
      %22 = dma.hbm_to_vmem [thread:$0]  %s0, 128, %s20, [#allocation3]
    $region5: #{tpu_custom_call.1} parent=1 // pred_fallthru
      _
    // Predicated region
    $region6: #{tpu_custom_call.1} parent=1 // pred_check
      _
    $region7: #{tpu_custom_call.1} parent=1 // pred_check_branch
      %24 = sbr.rel (0) target = $region9
    $region8: #{tpu_custom_call.1} parent=1 // pred_region
      %s26 = ssub.s32 128, 128
      %27 = vsyncadd [#allocation6], %s26
      %s29 = sshll.u32 [#allocation5], 4
      %s30 = int_to_ptr.vmem [resolvable:$true] %s29
      %32 = dma.hbm_to_vmem [thread:$0]  %s1, 128, %s30, [#allocation6]
    $region9: #{tpu_custom_call.1} parent=1 // pred_fallthru
      _
    // Predicated region
    $region10: #{tpu_custom_call.1} parent=1 // pred_check
      _
    $region11: #{tpu_custom_call.1} parent=1 // pred_check_branch
      %34 = sbr.rel (0) target = $region13
    $region12: #{tpu_custom_call.1} parent=1 // pred_region
      %s36 = ssub.s32 128, 128
      %37 = vsyncadd [#allocation6], %s36
      %s39 = sshll.u32 [#allocation7], 4
      %s40 = int_to_ptr.vmem [resolvable:$true] %s39
      %42 = dma.hbm_to_vmem [thread:$0]  %s2, 128, %s40, [#allocation6]
    $region13: #{tpu_custom_call.1} parent=1 // pred_fallthru
      _
    // Predicated region
    $region14: #{tpu_custom_call.1} parent=1 // pred_check
      _
    $region15: #{tpu_custom_call.1} parent=1 // pred_check_branch
      %44 = sbr.rel (0) target = $region17
    $region16: #{tpu_custom_call.1} parent=1 // pred_region
      %s46 = ssub.s32 128, 128
      %47 = vsyncadd [#allocation9], %s46
      %s49 = sshll.u32 [#allocation8], 4
      %s50 = int_to_ptr.vmem [resolvable:$true] %s49
      %52 = dma.hbm_to_vmem [thread:$0]  %s3, 128, %s50, [#allocation9]
    $region17: #{tpu_custom_call.1} parent=1 // pred_fallthru
      _
    // Predicated region
    $region18: #{tpu_custom_call.1} parent=1 // pred_check
      _
    $region19: #{tpu_custom_call.1} parent=1 // pred_check_branch
      %54 = sbr.rel (0) target = $region21
    $region20: #{tpu_custom_call.1} parent=1 // pred_region
      %55 = dma.done [#allocation3], 128
    $region21: #{tpu_custom_call.1} parent=1 // pred_fallthru
      _
    // Predicated region
    $region22: #{tpu_custom_call.1} parent=1 // pred_check
      _
    $region23: #{tpu_custom_call.1} parent=1 // pred_check_branch
      %57 = sbr.rel (0) target = $region25
    $region24: #{tpu_custom_call.1} parent=1 // pred_region
      %58 = dma.done [#allocation6], 128
    $region25: #{tpu_custom_call.1} parent=1 // pred_fallthru
      _
    // Predicated region
    $region26: #{tpu_custom_call.1} parent=1 // pred_check
      _
    $region27: #{tpu_custom_call.1} parent=1 // pred_check_branch
      %60 = sbr.rel (0) target = $region29
    $region28: #{tpu_custom_call.1} parent=1 // pred_region
      %61 = dma.done [#allocation6], 128
    $region29: #{tpu_custom_call.1} parent=1 // pred_fallthru
      _
    // Predicated region
    $region30: #{tpu_custom_call.1} parent=1 // pred_check
      _
    $region31: #{tpu_custom_call.1} parent=1 // pred_check_branch
      %63 = sbr.rel (0) target = $region33
    $region32: #{tpu_custom_call.1} parent=1 // pred_region
      %64 = dma.done [#allocation9], 128
    $region33: #{tpu_custom_call.1} parent=1 // pred_fallthru
      _
    %v65 = vld [vmem:[#allocation2] sm:$0xff]
    %v66 = vld [vmem:[#allocation5] sm:$0xff]
    %v67 = vld [vmem:[#allocation7] sm:$0xff]
    %v68 = vld [vmem:[#allocation8] sm:$0xff]
    %s69 = smul.u32 0, 128
    %v70 = vlaneseq
    %v71 = vand.u32 %v70, 127
    %v72 = vstv %s69
    %v73 = vadd.s32 %v72, %v71
    %vm74 = vcmp.ge.s32.totalorder %v73, 28
    %vm75 = vcmp.lt.s32.totalorder %v73, 32
    %vm76 = vmand %vm74, %vm75
    %v77 = vmul.f32 %v65, 2.0
    %v78 = vsel %vm76, %v77, %v65
    %v79 = vadd.f32 %v67, 1e-10
    %vm80 = vcmp.lt.f32.partialorder %v79, 0.5
    %v81 = vadd.f32 %v79, 1.0
    %v82 = vsel %vm80, %v81, %v79
    %v83 = vsub.f32 %v82, 1.0
    %v84 = vadd.f32 %v83, 1.0
    %v85 = vrcp.pop %v84
    %v86 = vmul.f32 676.5204, %v85
    %v87 = vadd.f32 %v86, 1.0
    %v88 = vadd.f32 %v83, 2.0
    %v89 = vrcp.pop %v88
    %v90 = vmul.f32 -1259.1392, %v89
    %v91 = vadd.f32 %v87, %v90
    %v92 = vadd.f32 %v83, 3.0
    %v93 = vrcp.pop %v92
    %v94 = vmul.f32 771.3234, %v93
    %v95 = vadd.f32 %v91, %v94
    %v96 = vadd.f32 %v83, 4.0
    %v97 = vrcp.pop %v96
    %v98 = vmul.f32 -176.61504, %v97
    %v99 = vadd.f32 %v95, %v98
    %v100 = vadd.f32 %v83, 5.0
    %v101 = vrcp.pop %v100
    %v102 = vmul.f32 12.507343, %v101
    %v103 = vadd.f32 %v99, %v102
    %v104 = vadd.f32 %v83, 6.0
    %v105 = vrcp.pop %v104
    %v106 = vmul.f32 -0.1385711, %v105
    %v107 = vadd.f32 %v103, %v106
    %v108 = vadd.f32 %v83, 7.0
    %v109 = vrcp.pop %v108
    %v110 = vmul.f32 9.984369e-06, %v109
    %v111 = vadd.f32 %v107, %v110
    %v112 = vadd.f32 %v83, 8.0
    %v113 = vrcp.pop %v112
    %v114 = vmul.f32 1.5056327e-07, %v113
    %v115 = vadd.f32 %v111, %v114
    %v116 = vadd.f32 %v108, 0.5
    %v117 = vadd.f32 %v83, 0.5
    %v118 = vlog2.pop %v116
    %v119 = vmul.f32 %v118, 0.6931472
    %v120 = vmul.f32 %v117, %v119
    %v121 = vadd.f32 %v120, 0.9189385
    %v122 = vsub.f32 %v121, %v116
    %v123 = vlog2.pop %v115
    %v124 = vmul.f32 %v123, 0.6931472
    %v125 = vadd.f32 %v122, %v124
    %v126 = vlog2.pop %v79
    %v127 = vmul.f32 %v126, 0.6931472
    %v128 = vsub.f32 %v125, %v127
    %v129 = vsel %vm80, %v128, %v125
    %v130 = vadd.f32 %v78, 1.0
    %vm131 = vcmp.lt.f32.partialorder %v130, 0.5
    %v132 = vadd.f32 %v130, 1.0
    %v133 = vsel %vm131, %v132, %v130
    %v134 = vsub.f32 %v133, 1.0
    %v135 = vadd.f32 %v134, 1.0
    %v136 = vrcp.pop %v135
    %v137 = vmul.f32 676.5204, %v136
    %v138 = vadd.f32 %v137, 1.0
    %v139 = vadd.f32 %v134, 2.0
    %v140 = vrcp.pop %v139
    %v141 = vmul.f32 -1259.1392, %v140
    %v142 = vadd.f32 %v138, %v141
    %v143 = vadd.f32 %v134, 3.0
    %v144 = vrcp.pop %v143
    %v145 = vmul.f32 771.3234, %v144
    %v146 = vadd.f32 %v142, %v145
    %v147 = vadd.f32 %v134, 4.0
    %v148 = vrcp.pop %v147
    %v149 = vmul.f32 -176.61504, %v148
    %v150 = vadd.f32 %v146, %v149
    %v151 = vadd.f32 %v134, 5.0
    %v152 = vrcp.pop %v151
    %v153 = vmul.f32 12.507343, %v152
    %v154 = vadd.f32 %v150, %v153
    %v155 = vadd.f32 %v134, 6.0
    %v156 = vrcp.pop %v155
    %v157 = vmul.f32 -0.1385711, %v156
    %v158 = vadd.f32 %v154, %v157
    %v159 = vadd.f32 %v134, 7.0
    %v160 = vrcp.pop %v159
    %v161 = vmul.f32 9.984369e-06, %v160
    %v162 = vadd.f32 %v158, %v161
    %v163 = vadd.f32 %v134, 8.0
    %v164 = vrcp.pop %v163
    %v165 = vmul.f32 1.5056327e-07, %v164
    %v166 = vadd.f32 %v162, %v165
    %v167 = vadd.f32 %v159, 0.5
    %v168 = vadd.f32 %v134, 0.5
    %v169 = vlog2.pop %v167
    %v170 = vmul.f32 %v169, 0.6931472
    %v171 = vmul.f32 %v168, %v170
    %v172 = vadd.f32 %v171, 0.9189385
    %v173 = vsub.f32 %v172, %v167
    %v174 = vlog2.pop %v166
    %v175 = vmul.f32 %v174, 0.6931472
    %v176 = vadd.f32 %v173, %v175
    %v177 = vlog2.pop %v130
    %v178 = vmul.f32 %v177, 0.6931472
    %v179 = vsub.f32 %v176, %v178
    %v180 = vsel %vm131, %v179, %v176
    %v181 = vadd.f32 %v129, %v180
    %v182 = vadd.f32 %v78, %v67
    %v183 = vadd.f32 %v182, 1e-10
    %vm184 = vcmp.lt.f32.partialorder %v183, 0.5
    %v185 = vadd.f32 %v183, 1.0
    %v186 = vsel %vm184, %v185, %v183
    %v187 = vsub.f32 %v186, 1.0
    %v188 = vadd.f32 %v187, 1.0
    %v189 = vrcp.pop %v188
    %v190 = vmul.f32 676.5204, %v189
    %v191 = vadd.f32 %v190, 1.0
    %v192 = vadd.f32 %v187, 2.0
    %v193 = vrcp.pop %v192
    %v194 = vmul.f32 -1259.1392, %v193
    %v195 = vadd.f32 %v191, %v194
    %v196 = vadd.f32 %v187, 3.0
    %v197 = vrcp.pop %v196
    %v198 = vmul.f32 771.3234, %v197
    %v199 = vadd.f32 %v195, %v198
    %v200 = vadd.f32 %v187, 4.0
    %v201 = vrcp.pop %v200
    %v202 = vmul.f32 -176.61504, %v201
    %v203 = vadd.f32 %v199, %v202
    %v204 = vadd.f32 %v187, 5.0
    %v205 = vrcp.pop %v204
    %v206 = vmul.f32 12.507343, %v205
    %v207 = vadd.f32 %v203, %v206
    %v208 = vadd.f32 %v187, 6.0
    %v209 = vrcp.pop %v208
    %v210 = vmul.f32 -0.1385711, %v209
    %v211 = vadd.f32 %v207, %v210
    %v212 = vadd.f32 %v187, 7.0
    %v213 = vrcp.pop %v212
    %v214 = vmul.f32 9.984369e-06, %v213
    %v215 = vadd.f32 %v211, %v214
    %v216 = vadd.f32 %v187, 8.0
    %v217 = vrcp.pop %v216
    %v218 = vmul.f32 1.5056327e-07, %v217
    %v219 = vadd.f32 %v215, %v218
    %v220 = vadd.f32 %v212, 0.5
    %v221 = vadd.f32 %v187, 0.5
    %v222 = vlog2.pop %v220
    %v223 = vmul.f32 %v222, 0.6931472
    %v224 = vmul.f32 %v221, %v223
    %v225 = vadd.f32 %v224, 0.9189385
    %v226 = vsub.f32 %v225, %v220
    %v227 = vlog2.pop %v219
    %v228 = vmul.f32 %v227, 0.6931472
    %v229 = vadd.f32 %v226, %v228
    %v230 = vlog2.pop %v183
    %v231 = vmul.f32 %v230, 0.6931472
    %v232 = vsub.f32 %v229, %v231
    %v233 = vsel %vm184, %v232, %v229
    %v234 = vsub.f32 %v181, %v233
    %v235 = vrcp.pop %v79
    %v236 = vmul.f32 %v66, %v235
    %v237 = vadd.f32 %v236, 1.0
    %v238 = vlog2.pop %v237
    %v239 = vmul.f32 %v238, 0.6931472
    %v240 = vmul.f32 %v182, %v239
    %v241 = vadd.f32 %v66, 1e-10
    %v242 = vlog2.pop %v241
    %v243 = vmul.f32 %v242, 0.6931472
    %v244 = vsub.f32 %v127, %v243
    %v245 = vmul.f32 %v78, %v244
    %v246 = vadd.f32 %v240, %v245
    %v247 = vadd.f32 %v234, %v246
    %v248 = vsub.f32 1.0, %v68
    %v249 = vadd.f32 %v248, 1e-10
    %v250 = vlog2.pop %v249
    %v251 = vmul.f32 %v250, 0.6931472
    %v252 = vsub.f32 %v247, %v251
    %v253 = vadd.f32 %v67, %v66
    %v254 = vadd.f32 %v253, 1e-10
    %v255 = vrcp.pop %v254
    %v256 = vmul.f32 %v67, %v255
    %v257 = vlog2.pop %v256
    %v258 = vmul.f32 %v257, 0.6931472
    %v259 = vmul.f32 %v67, %v258
    %v260 = vmul.f32 %v259, 1.442695
    %v261 = vpow.pop %v260
    %v262 = vmul.f32 %v248, %v261
    %v263 = vadd.f32 %v68, %v262
    %v264 = vadd.f32 %v263, 1e-10
    %v265 = vlog2.pop %v264
    %v266 = vmul.f32 %v265, 0.6931472
    %v267 = vsub.f32 0.0, %v266
    %vm268 = vcmp.le.f32.partialorder %v78, 1e-08
    %v269 = vsel %vm268, %v267, %v252
    %v270 = vsel %vm75, %v269, 0.0
    %v271 = vadd.f32 %v270, 0.0
    %272 = vst [vmem:[#allocation10] sm:$0xff] %v271
    // Predicated region
    $region34: #{tpu_custom_call.1} parent=1 // pred_check
      _
    $region35: #{tpu_custom_call.1} parent=1 // pred_check_branch
      %274 = sbr.rel (0) target = $region37
    $region36: #{tpu_custom_call.1} parent=1 // pred_region
      %s276 = ssub.s32 128, 128
      %277 = vsyncadd [#allocation4], %s276
      %s279 = sshll.u32 [#allocation10], 4
      %s280 = int_to_ptr.vmem [resolvable:$true] %s279
      %282 = dma.vmem_to_hbm [thread:$0]  %s280, 128, %s4, [#allocation4]
    $region37: #{tpu_custom_call.1} parent=1 // pred_fallthru
      _
    // Predicated region
    $region38: #{tpu_custom_call.1} parent=1 // pred_check
      _
    $region39: #{tpu_custom_call.1} parent=1 // pred_check_branch
      %284 = sbr.rel (0) target = $region41
    $region40: #{tpu_custom_call.1} parent=1 // pred_region
      %285 = dma.done [#allocation4], 128
    $region41: #{tpu_custom_call.1} parent=1 // pred_fallthru
      _
    %286 = vsyncpa [#allocation3], 1
    %287 = vsyncpa [#allocation6], 1
    %288 = vsyncpa [#allocation9], 1
    %289 = vsyncpa [#allocation4], 1

</llo_original>
